<compile_context>
chip_gen: v7x
topology: tpu7x:2x2x1
jax: 0.10.0
libtpu: 0.0.40
codegen_flags: <defaults>
</compile_context>

<pallas_src>
import functools

import jax
import jax.numpy as jnp
from jax.experimental import pallas as pl
from jax.experimental.pallas import tpu as pltpu

_LANE = 128
_SUBLANE = 8  # f32 sublane granularity


def _round_up(x, m):
    return ((x + m - 1) // m) * m


def _fused_mlp_kernel(*refs, num_layers, activation):
    # refs = (x, w_0..w_{L-1}, b_0..b_{L-1}, out)
    x_ref = refs[0]
    w_refs = refs[1:1 + num_layers]
    b_refs = refs[1 + num_layers:1 + 2 * num_layers]
    o_ref = refs[-1]

    h = x_ref[...]
    for i in range(num_layers):
        # Cast the LHS to the weight dtype (bf16 by default) so the MXU runs
        # its native bf16 path with f32 accumulation; the epilogue (bias,
        # activation) stays f32.  NOTE: with bf16 weights the f32 accumulator
        # is re-cast to bf16 before each subsequent matmul, so rounding
        # compounds across layers (tested with a loosened tolerance below).
        h = jnp.dot(h.astype(w_refs[i].dtype), w_refs[i][...],
                    preferred_element_type=jnp.float32)
        h = h + b_refs[i][...]
        if i < num_layers - 1:
            if activation == "relu":
                h = jnp.maximum(h, 0.0)
            else:  # "sigmoid" (validated in the wrapper)
                h = jax.nn.sigmoid(h)
    o_ref[...] = h.astype(o_ref.dtype)


def prepare_mlp_params(params, *, compute_dtype=jnp.bfloat16):
    """One-time parameter prep (do NOT call per forward pass).

    params: list of (W_t, b) with W_t: (in, out), b: (out,)  [torch weight
            (out, in) transposed once up front].

    Zero-pads every in/out feature dim to a multiple of 128 (zero rows/cols
    keep the math exact: padded hidden units feed zero weight rows in the next
    layer, so even sigmoid's 0.5 on padded units contributes nothing), casts
    weights to the MXU compute dtype and biases to f32 (1, n_pad) rows.
    """
    dims = [int(params[0][0].shape[0])] + [int(w.shape[1]) for w, _ in params]
    pdims = [_round_up(d, _LANE) for d in dims]
    ws, bs = [], []
    for i, (w, b) in enumerate(params):
        k, n = w.shape
        kp, np_ = pdims[i], pdims[i + 1]
        w = jnp.pad(w, ((0, kp - k), (0, np_ - n)))          # zero pad -> exact
        ws.append(w.astype(compute_dtype))
        bs.append(jnp.pad(b, ((0, np_ - n),)).reshape(1, np_).astype(jnp.float32))
    return dict(ws=ws, bs=bs, dims=dims, padded_dims=pdims,
                compute_dtype=jnp.dtype(compute_dtype))


def mlp_forward(x, prepped, activation="relu", *, tm=None):
    """Fused MLP forward: Linear -> act -> ... -> Linear (no act on last layer).

    x:       (M, input_dim), float32 (or any float dtype)
    prepped: output of prepare_mlp_params
    """
    if activation not in ("relu", "sigmoid"):
        raise ValueError(f"unsupported activation: {activation}")

    ws, bs = prepped["ws"], prepped["bs"]
    dims, pdims = prepped["dims"], prepped["padded_dims"]
    num_layers = len(ws)
    out_dtype = x.dtype
    M, k0 = x.shape
    if k0 != dims[0]:
        raise ValueError(f"x feature dim {k0} != model input dim {dims[0]}")
    n_out, n_pad = dims[-1], pdims[-1]

    # Lane-pad x's contraction dim (matching weight rows are already zero),
    # so the x-tile loads are full 128-lane vectors.
    if pdims[0] != k0:
        x = jnp.pad(x, ((0, 0), (0, pdims[0] - k0)))

    # ---- generation-aware VMEM budget --------------------------------------
    try:
        vmem_cap = int(pltpu.get_tpu_info().vmem_capacity_bytes)
    except Exception:  # no TPU info available -> assume the smallest (v7x, 64 MiB)
        vmem_cap = 64 << 20
    vmem_budget = int(0.70 * vmem_cap)     # working-set target for tile sizing
    vmem_limit_cap = int(0.85 * vmem_cap)  # scoped-VMEM ceiling handed to Mosaic

    w_itemsize = prepped["compute_dtype"].itemsize
    x_itemsize = jnp.dtype(x.dtype).itemsize
    o_itemsize = jnp.dtype(out_dtype).itemsize
    w_bytes = sum(pdims[i] * pdims[i + 1] * w_itemsize for i in range(num_layers))
    b_bytes = sum(pdims[i + 1] * 4 for i in range(num_layers))

    def vmem_estimate(tile_m):
        # Weights/biases: single-buffered (constant index_map + Buffered(1)).
        # x / out tiles: double-buffered by the pipeliner.
        io = 2 * tile_m * (pdims[0] * x_itemsize + n_pad * o_itemsize)
        act = 2 * tile_m * max(pdims) * 4  # largest live f32 intermediate (+slack)
        return w_bytes + b_bytes + io + act

    # ---- batch-tile selection -----------------------------------------------
    if tm is None:
        tm = min(_round_up(M, _SUBLANE), 1024)
        # Keep >= 2 batch tiles so the "parallel" grid axis can split across
        # both TensorCores on megacore parts (v7x).
        tm = min(tm, max(_SUBLANE, _round_up(pl.cdiv(M, 2), _SUBLANE)))
    tm = max(_SUBLANE, (tm // _SUBLANE) * _SUBLANE)
    while tm > _SUBLANE and vmem_estimate(tm) > vmem_budget:
        tm = max(_SUBLANE, ((tm // 2) // _SUBLANE) * _SUBLANE)
    if vmem_estimate(tm) > vmem_budget:
        # TODO(synk): tile the widest layer's out-features over an extra
        # "arbitrary" grid axis instead of requiring full weight residency.
        raise ValueError(
            f"MLP weights ({(w_bytes + b_bytes) / 2**20:.1f} MiB) exceed the "
            f"VMEM budget ({vmem_budget / 2**20:.1f} MiB); the full-residency "
            f"fused kernel is not applicable at these sizes.")

    grid_m = pl.cdiv(M, tm)  # ragged final tile handled by Pallas edge masking
    vmem_limit = int(min(vmem_limit_cap,
                         max(int(1.5 * vmem_estimate(tm)), 32 << 20)))

    kernel = functools.partial(_fused_mlp_kernel, num_layers=num_layers,
                               activation=activation)

    def run(single_buffer_weights):
        def resident_spec(shape):
            if single_buffer_weights:
                return pl.BlockSpec(shape, lambda i: (0, 0),
                                    pipeline_mode=pl.Buffered(1))
            return pl.BlockSpec(shape, lambda i: (0, 0))

        in_specs = [pl.BlockSpec((tm, pdims[0]), lambda i: (i, 0))]
        in_specs += [resident_spec(w.shape) for w in ws]
        in_specs += [resident_spec(b.shape) for b in bs]

        return pl.pallas_call(
            kernel,
            out_shape=jax.ShapeDtypeStruct((M, n_pad), out_dtype),
            grid_spec=pltpu.PrefetchScalarGridSpec(
                num_scalar_prefetch=0,
                grid=(grid_m,),
                in_specs=in_specs,
                out_specs=pl.BlockSpec((tm, n_pad), lambda i: (i, 0)),
            ),
            compiler_params=pltpu.CompilerParams(
                dimension_semantics=("parallel",),
                vmem_limit_bytes=vmem_limit,
            ),
        )(x, *ws, *bs)

    try:
        out = jax.block_until_ready(run(True))
    except Exception:
        # pipeline_mode=pl.Buffered(1) not supported by this jax build; fall
        # back to default (double-buffered) resident weights.
        out = run(False)

    # Only the lane-padding columns are sliced off (they are exactly zero);
    # the batch axis was never padded.
    return out[:, :n_out] if n_pad != n_out else out


def init_mlp_params(key, input_dim, output_dim, hidden_dims=(256, 128)):
    """Deterministic synthetic params. Returns list of (W_t, b) with W_t: (in, out)."""
    dims = [input_dim, *hidden_dims, output_dim]
    params = []
    for i in range(len(dims) - 1):
        key, kw, kb = jax.random.split(key, 3)
        fan_in, fan_out = dims[i], dims[i + 1]
        bound = 1.0 / jnp.sqrt(fan_in)
        # PyTorch nn.Linear stores weight as (out, in); we keep it transposed.
        w_t = jax.random.uniform(kw, (fan_in, fan_out), jnp.float32, -bound, bound)
        b = jax.random.uniform(kb, (fan_out,), jnp.float32, -bound, bound)
        params.append((w_t, b))
    return params


if __name__ == "__main__":
    key = jax.random.PRNGKey(0)
    batch, input_dim, output_dim = 8, 64, 32
    hidden_dims = (256, 128)

    k_params, k_x = jax.random.split(key)
    params = init_mlp_params(k_params, input_dim, output_dim, hidden_dims)
    x = jax.random.normal(k_x, (batch, input_dim), jnp.float32)

    def reference(x, params, act):
        y = x
        for i, (w_t, b) in enumerate(params):
            y = y @ w_t + b
            if i < len(params) - 1:
                y = jnp.maximum(y, 0.0) if act == "relu" else jax.nn.sigmoid(y)
        return y

    # f32 MXU path: tight check against the plain-JAX reference.
    prep_f32 = prepare_mlp_params(params, compute_dtype=jnp.float32)
    y = mlp_forward(x, prep_f32, activation="relu")
    jax.block_until_ready(y)
    assert y.shape == (batch, output_dim)
    assert jnp.allclose(y, reference(x, params, "relu"), atol=1e-5, rtol=1e-5)

    y_sig = mlp_forward(x, prep_f32, activation="sigmoid")
    jax.block_until_ready(y_sig)
    assert jnp.allclose(y_sig, reference(x, params, "sigmoid"), atol=1e-5, rtol=1e-5)

    # Default bf16-weight MXU path (f32 accumulation): loosened tolerance
    # because the accumulator is re-cast to bf16 between layers.
    prep_bf16 = prepare_mlp_params(params)
    y_bf16 = mlp_forward(x, prep_bf16, activation="relu")
    jax.block_until_ready(y_bf16)
    assert jnp.allclose(y_bf16, reference(x, params, "relu"), atol=5e-2, rtol=5e-2)

    print("KERNEL_OK")
</pallas_src>

<mosaic_0001>
module attributes {stable_mosaic.version = 11 : i64} {
  func.func @_fused_mlp_kernel(%arg0: i32, %arg1: memref<8x128xf32, #tpu.memory_space<vmem>>, %arg2: memref<128x256xf32, #tpu.memory_space<vmem>>, %arg3: memref<256x128xf32, #tpu.memory_space<vmem>>, %arg4: memref<128x128xf32, #tpu.memory_space<vmem>>, %arg5: memref<1x256xf32, #tpu.memory_space<vmem>>, %arg6: memref<1x128xf32, #tpu.memory_space<vmem>>, %arg7: memref<1x128xf32, #tpu.memory_space<vmem>>, %arg8: memref<8x128xf32, #tpu.memory_space<vmem>>) attributes {dimension_semantics = [#tpu.dimension_semantics<parallel>], iteration_bounds = array<i64: 1>, scalar_prefetch = 0 : i64, scratch_operands = 0 : i64, tpu.core_type = #tpu.core_type<tc>, window_params = [{transform_indices = @transform_0, window_bounds = array<i64: 8, 128>}, {pipeline_mode = #tpu.pipeline_mode<synchronous>, transform_indices = @transform_1, window_bounds = array<i64: 128, 256>}, {pipeline_mode = #tpu.pipeline_mode<synchronous>, transform_indices = @transform_2, window_bounds = array<i64: 256, 128>}, {pipeline_mode = #tpu.pipeline_mode<synchronous>, transform_indices = @transform_3, window_bounds = array<i64: 128, 128>}, {pipeline_mode = #tpu.pipeline_mode<synchronous>, transform_indices = @transform_4, window_bounds = array<i64: 1, 256>}, {pipeline_mode = #tpu.pipeline_mode<synchronous>, transform_indices = @transform_5, window_bounds = array<i64: 1, 128>}, {pipeline_mode = #tpu.pipeline_mode<synchronous>, transform_indices = @transform_6, window_bounds = array<i64: 1, 128>}, {transform_indices = @transform_7, window_bounds = array<i64: 8, 128>}]} {
    %c0 = arith.constant 0 : index
    %c0_0 = arith.constant 0 : index
    %0 = vector.load %arg1[%c0, %c0_0] : memref<8x128xf32, #tpu.memory_space<vmem>>, vector<8x128xf32>
    %c0_1 = arith.constant 0 : index
    %c0_2 = arith.constant 0 : index
    %1 = vector.load %arg2[%c0_1, %c0_2] : memref<128x256xf32, #tpu.memory_space<vmem>>, vector<128x256xf32>
    %cst = arith.constant dense<0.000000e+00> : vector<8x256xf32>
    %2 = tpu.matmul %0, %1, %cst {dimension_numbers = #tpu.dot_dimension_numbers<[1], [0], [0], [1], [0, 0, 1, 1], [], []>} : vector<8x128xf32>, vector<128x256xf32>, vector<8x256xf32> -> vector<8x256xf32>
    %c0_3 = arith.constant 0 : index
    %c0_4 = arith.constant 0 : index
    %3 = vector.load %arg5[%c0_3, %c0_4] : memref<1x256xf32, #tpu.memory_space<vmem>>, vector<1x256xf32>
    %4 = vector.broadcast %3 : vector<1x256xf32> to vector<8x256xf32>
    %5 = arith.addf %2, %4 : vector<8x256xf32>
    %cst_5 = arith.constant 0.000000e+00 : f32
    %6 = vector.broadcast %cst_5 : f32 to vector<8x256xf32>
    %7 = arith.maximumf %5, %6 : vector<8x256xf32>
    %c0_6 = arith.constant 0 : index
    %c0_7 = arith.constant 0 : index
    %8 = vector.load %arg3[%c0_6, %c0_7] : memref<256x128xf32, #tpu.memory_space<vmem>>, vector<256x128xf32>
    %cst_8 = arith.constant dense<0.000000e+00> : vector<8x128xf32>
    %9 = tpu.matmul %7, %8, %cst_8 {dimension_numbers = #tpu.dot_dimension_numbers<[1], [0], [0], [1], [0, 0, 1, 1], [], []>} : vector<8x256xf32>, vector<256x128xf32>, vector<8x128xf32> -> vector<8x128xf32>
    %c0_9 = arith.constant 0 : index
    %c0_10 = arith.constant 0 : index
    %10 = vector.load %arg6[%c0_9, %c0_10] : memref<1x128xf32, #tpu.memory_space<vmem>>, vector<1x128xf32>
    %11 = vector.broadcast %10 : vector<1x128xf32> to vector<8x128xf32>
    %12 = arith.addf %9, %11 : vector<8x128xf32>
    %cst_11 = arith.constant 0.000000e+00 : f32
    %13 = vector.broadcast %cst_11 : f32 to vector<8x128xf32>
    %14 = arith.maximumf %12, %13 : vector<8x128xf32>
    %c0_12 = arith.constant 0 : index
    %c0_13 = arith.constant 0 : index
    %15 = vector.load %arg4[%c0_12, %c0_13] : memref<128x128xf32, #tpu.memory_space<vmem>>, vector<128x128xf32>
    %cst_14 = arith.constant dense<0.000000e+00> : vector<8x128xf32>
    %16 = tpu.matmul %14, %15, %cst_14 {dimension_numbers = #tpu.dot_dimension_numbers<[1], [0], [0], [1], [0, 0, 1, 1], [], []>} : vector<8x128xf32>, vector<128x128xf32>, vector<8x128xf32> -> vector<8x128xf32>
    %c0_15 = arith.constant 0 : index
    %c0_16 = arith.constant 0 : index
    %17 = vector.load %arg7[%c0_15, %c0_16] : memref<1x128xf32, #tpu.memory_space<vmem>>, vector<1x128xf32>
    %18 = vector.broadcast %17 : vector<1x128xf32> to vector<8x128xf32>
    %19 = arith.addf %16, %18 : vector<8x128xf32>
    %c0_17 = arith.constant 0 : index
    %c0_18 = arith.constant 0 : index
    %20 = vector.load %arg8[%c0_17, %c0_18] : memref<8x128xf32, #tpu.memory_space<vmem>>, vector<8x128xf32>
    tpu.vector_store %arg8[%c0_17, %c0_18], %19 {strides = array<i32>} : memref<8x128xf32, #tpu.memory_space<vmem>>, vector<8x128xf32>,
    return
  }
  func.func @transform_0(%arg0: i32) -> (i32, i32) {
    %c0_i32 = arith.constant 0 : i32
    %c0_i32_0 = arith.constant 0 : i32
    return %arg0, %c0_i32 : i32, i32
  }
  func.func @transform_1(%arg0: i32) -> (i32, i32) {
    %c0_i32 = arith.constant 0 : i32
    %c0_i32_0 = arith.constant 0 : i32
    %c0_i32_1 = arith.constant 0 : i32
    return %c0_i32, %c0_i32_0 : i32, i32
  }
  func.func @transform_2(%arg0: i32) -> (i32, i32) {
    %c0_i32 = arith.constant 0 : i32
    %c0_i32_0 = arith.constant 0 : i32
    %c0_i32_1 = arith.constant 0 : i32
    return %c0_i32, %c0_i32_0 : i32, i32
  }
  func.func @transform_3(%arg0: i32) -> (i32, i32) {
    %c0_i32 = arith.constant 0 : i32
    %c0_i32_0 = arith.constant 0 : i32
    %c0_i32_1 = arith.constant 0 : i32
    return %c0_i32, %c0_i32_0 : i32, i32
  }
  func.func @transform_4(%arg0: i32) -> (i32, i32) {
    %c0_i32 = arith.constant 0 : i32
    %c0_i32_0 = arith.constant 0 : i32
    %c0_i32_1 = arith.constant 0 : i32
    return %c0_i32, %c0_i32_0 : i32, i32
  }
  func.func @transform_5(%arg0: i32) -> (i32, i32) {
    %c0_i32 = arith.constant 0 : i32
    %c0_i32_0 = arith.constant 0 : i32
    %c0_i32_1 = arith.constant 0 : i32
    return %c0_i32, %c0_i32_0 : i32, i32
  }
  func.func @transform_6(%arg0: i32) -> (i32, i32) {
    %c0_i32 = arith.constant 0 : i32
    %c0_i32_0 = arith.constant 0 : i32
    %c0_i32_1 = arith.constant 0 : i32
    return %c0_i32, %c0_i32_0 : i32, i32
  }
  func.func @transform_7(%arg0: i32) -> (i32, i32) {
    %c0_i32 = arith.constant 0 : i32
    %c0_i32_0 = arith.constant 0 : i32
    return %arg0, %c0_i32 : i32, i32
  }
}

module attributes {stable_mosaic.version = 11 : i64} {
  func.func @_fused_mlp_kernel(%arg0: i32, %arg1: memref<8x128xf32, #tpu.memory_space<vmem>>, %arg2: memref<128x256xf32, #tpu.memory_space<vmem>>, %arg3: memref<256x128xf32, #tpu.memory_space<vmem>>, %arg4: memref<128x128xf32, #tpu.memory_space<vmem>>, %arg5: memref<1x256xf32, #tpu.memory_space<vmem>>, %arg6: memref<1x128xf32, #tpu.memory_space<vmem>>, %arg7: memref<1x128xf32, #tpu.memory_space<vmem>>, %arg8: memref<8x128xf32, #tpu.memory_space<vmem>>) attributes {dimension_semantics = [#tpu.dimension_semantics<parallel>], iteration_bounds = array<i64: 1>, scalar_prefetch = 0 : i64, scratch_operands = 0 : i64, tpu.core_type = #tpu.core_type<tc>, window_params = [{transform_indices = @transform_0, window_bounds = array<i64: 8, 128>}, {pipeline_mode = #tpu.pipeline_mode<synchronous>, transform_indices = @transform_1, window_bounds = array<i64: 128, 256>}, {pipeline_mode = #tpu.pipeline_mode<synchronous>, transform_indices = @transform_2, window_bounds = array<i64: 256, 128>}, {pipeline_mode = #tpu.pipeline_mode<synchronous>, transform_indices = @transform_3, window_bounds = array<i64: 128, 128>}, {pipeline_mode = #tpu.pipeline_mode<synchronous>, transform_indices = @transform_4, window_bounds = array<i64: 1, 256>}, {pipeline_mode = #tpu.pipeline_mode<synchronous>, transform_indices = @transform_5, window_bounds = array<i64: 1, 128>}, {pipeline_mode = #tpu.pipeline_mode<synchronous>, transform_indices = @transform_6, window_bounds = array<i64: 1, 128>}, {transform_indices = @transform_7, window_bounds = array<i64: 8, 128>}]} {
    %c0 = arith.constant 0 : index
    %c0_0 = arith.constant 0 : index
    %0 = vector.load %arg1[%c0, %c0_0] : memref<8x128xf32, #tpu.memory_space<vmem>>, vector<8x128xf32>
    %c0_1 = arith.constant 0 : index
    %c0_2 = arith.constant 0 : index
    %1 = vector.load %arg2[%c0_1, %c0_2] : memref<128x256xf32, #tpu.memory_space<vmem>>, vector<128x256xf32>
    %cst = arith.constant dense<0.000000e+00> : vector<8x256xf32>
    %2 = tpu.matmul %0, %1, %cst {dimension_numbers = #tpu.dot_dimension_numbers<[1], [0], [0], [1], [0, 0, 1, 1], [], []>} : vector<8x128xf32>, vector<128x256xf32>, vector<8x256xf32> -> vector<8x256xf32>
    %c0_3 = arith.constant 0 : index
    %c0_4 = arith.constant 0 : index
    %3 = vector.load %arg5[%c0_3, %c0_4] : memref<1x256xf32, #tpu.memory_space<vmem>>, vector<1x256xf32>
    %4 = vector.broadcast %3 : vector<1x256xf32> to vector<8x256xf32>
    %5 = arith.addf %2, %4 : vector<8x256xf32>
    %cst_5 = arith.constant 0.000000e+00 : f32
    %6 = vector.broadcast %cst_5 : f32 to vector<8x256xf32>
    %7 = arith.maximumf %5, %6 : vector<8x256xf32>
    %c0_6 = arith.constant 0 : index
    %c0_7 = arith.constant 0 : index
    %8 = vector.load %arg3[%c0_6, %c0_7] : memref<256x128xf32, #tpu.memory_space<vmem>>, vector<256x128xf32>
    %cst_8 = arith.constant dense<0.000000e+00> : vector<8x128xf32>
    %9 = tpu.matmul %7, %8, %cst_8 {dimension_numbers = #tpu.dot_dimension_numbers<[1], [0], [0], [1], [0, 0, 1, 1], [], []>} : vector<8x256xf32>, vector<256x128xf32>, vector<8x128xf32> -> vector<8x128xf32>
    %c0_9 = arith.constant 0 : index
    %c0_10 = arith.constant 0 : index
    %10 = vector.load %arg6[%c0_9, %c0_10] : memref<1x128xf32, #tpu.memory_space<vmem>>, vector<1x128xf32>
    %11 = vector.broadcast %10 : vector<1x128xf32> to vector<8x128xf32>
    %12 = arith.addf %9, %11 : vector<8x128xf32>
    %cst_11 = arith.constant 0.000000e+00 : f32
    %13 = vector.broadcast %cst_11 : f32 to vector<8x128xf32>
    %14 = arith.maximumf %12, %13 : vector<8x128xf32>
    %c0_12 = arith.constant 0 : index
    %c0_13 = arith.constant 0 : index
    %15 = vector.load %arg4[%c0_12, %c0_13] : memref<128x128xf32, #tpu.memory_space<vmem>>, vector<128x128xf32>
    %cst_14 = arith.constant dense<0.000000e+00> : vector<8x128xf32>
    %16 = tpu.matmul %14, %15, %cst_14 {dimension_numbers = #tpu.dot_dimension_numbers<[1], [0], [0], [1], [0, 0, 1, 1], [], []>} : vector<8x128xf32>, vector<128x128xf32>, vector<8x128xf32> -> vector<8x128xf32>
    %c0_15 = arith.constant 0 : index
    %c0_16 = arith.constant 0 : index
    %17 = vector.load %arg7[%c0_15, %c0_16] : memref<1x128xf32, #tpu.memory_space<vmem>>, vector<1x128xf32>
    %18 = vector.broadcast %17 : vector<1x128xf32> to vector<8x128xf32>
    %19 = arith.addf %16, %18 : vector<8x128xf32>
    %c0_17 = arith.constant 0 : index
    %c0_18 = arith.constant 0 : index
    %20 = vector.load %arg8[%c0_17, %c0_18] : memref<8x128xf32, #tpu.memory_space<vmem>>, vector<8x128xf32>
    tpu.vector_store %arg8[%c0_17, %c0_18], %19 {strides = array<i32>} : memref<8x128xf32, #tpu.memory_space<vmem>>, vector<8x128xf32>,
    return
  }
  func.func @transform_0(%arg0: i32) -> (i32, i32) {
    %c0_i32 = arith.constant 0 : i32
    %c0_i32_0 = arith.constant 0 : i32
    return %arg0, %c0_i32 : i32, i32
  }
  func.func @transform_1(%arg0: i32) -> (i32, i32) {
    %c0_i32 = arith.constant 0 : i32
    %c0_i32_0 = arith.constant 0 : i32
    %c0_i32_1 = arith.constant 0 : i32
    return %c0_i32, %c0_i32_0 : i32, i32
  }
  func.func @transform_2(%arg0: i32) -> (i32, i32) {
    %c0_i32 = arith.constant 0 : i32
    %c0_i32_0 = arith.constant 0 : i32
    %c0_i32_1 = arith.constant 0 : i32
    return %c0_i32, %c0_i32_0 : i32, i32
  }
  func.func @transform_3(%arg0: i32) -> (i32, i32) {
    %c0_i32 = arith.constant 0 : i32
    %c0_i32_0 = arith.constant 0 : i32
    %c0_i32_1 = arith.constant 0 : i32
    return %c0_i32, %c0_i32_0 : i32, i32
  }
  func.func @transform_4(%arg0: i32) -> (i32, i32) {
    %c0_i32 = arith.constant 0 : i32
    %c0_i32_0 = arith.constant 0 : i32
    %c0_i32_1 = arith.constant 0 : i32
    return %c0_i32, %c0_i32_0 : i32, i32
  }
  func.func @transform_5(%arg0: i32) -> (i32, i32) {
    %c0_i32 = arith.constant 0 : i32
    %c0_i32_0 = arith.constant 0 : i32
    %c0_i32_1 = arith.constant 0 : i32
    return %c0_i32, %c0_i32_0 : i32, i32
  }
  func.func @transform_6(%arg0: i32) -> (i32, i32) {
    %c0_i32 = arith.constant 0 : i32
    %c0_i32_0 = arith.constant 0 : i32
    %c0_i32_1 = arith.constant 0 : i32
    return %c0_i32, %c0_i32_0 : i32, i32
  }
  func.func @transform_7(%arg0: i32) -> (i32, i32) {
    %c0_i32 = arith.constant 0 : i32
    %c0_i32_0 = arith.constant 0 : i32
    return %arg0, %c0_i32 : i32, i32
  }
}

</mosaic_0001>

<llo_original>
// kernel: tpu_custom_call.1
$region0: #{tpu_custom_call.1}
  #allocation0 [shape = 'u32[]', space=smem, size = 0x4, offset = 0x4, fixed_abs, tag = 'smem constant byte address 0x4 - core index']
  #allocation1 [shape = 'u32[144,128]{1,0:T(1,128)}', space=vmem, size = 0x12000, scoped, tag = 'internal scratch']
  %s0 = inlined_call_operand.hbm [shape: f32[8,128], index: 0, kind: input, shape index: {}]
  %s1 = inlined_call_operand.hbm [shape: f32[128,256], index: 1, kind: input, shape index: {}]
  %s2 = inlined_call_operand.hbm [shape: f32[256,128], index: 2, kind: input, shape index: {}]
  %s3 = inlined_call_operand.hbm [shape: f32[128,128], index: 3, kind: input, shape index: {}]
  %s4 = inlined_call_operand.vmem [shape: f32[1,256], index: 4, kind: input, shape index: {}]
  %s5 = inlined_call_operand.vmem [shape: f32[1,128], index: 5, kind: input, shape index: {}]
  %s6 = inlined_call_operand.vmem [shape: f32[1,128], index: 6, kind: input, shape index: {}]
  %s7 = inlined_call_operand.hbm [shape: f32[8,128], index: 7, kind: output, shape index: {}]
  %s8 = sld [smem:[#allocation0]]
  $region54: #{tpu_custom_call.1} parent=0
    _
  %s10 = ssub.s32 1, %s8
  %s11 = scalar_select 0, %s10, %s8
  $region1: #{tpu_custom_call.1} parent=0
    #allocation2 [shape = 'u8[4096]{0}', space=vmem, size = 0x1000, scoped, tag = 'input window, operand 0, single buffered']
    #allocation3 [shape = 's32[1]{0}', space=sflag, size = 0x4, scoped, tag = 'scoped memory for tpu_custom_call.1']
    #allocation4 [shape = 's32[1]{0}', space=sflag, size = 0x4, scoped, tag = 'scoped memory for tpu_custom_call.1']
    #allocation5 [shape = 'u8[131072]{0}', space=vmem, size = 0x20000, scoped, tag = 'input window, operand 1, single buffered']
    #allocation6 [shape = 's32[1]{0}', space=sflag, size = 0x4, scoped, tag = 'scoped memory for tpu_custom_call.1']
    #allocation7 [shape = 'u8[131072]{0}', space=vmem, size = 0x20000, scoped, tag = 'input window, operand 2, single buffered']
    #allocation8 [shape = 'u8[65536]{0}', space=vmem, size = 0x10000, scoped, tag = 'input window, operand 3, single buffered']
    #allocation9 [shape = 's32[1]{0}', space=sflag, size = 0x4, scoped, tag = 'scoped memory for tpu_custom_call.1']
    #allocation10 [shape = 'u8[4096]{0}', space=vmem, size = 0x1000, scoped, tag = 'output window, operand 0, single buffered']
    %12 = vsyncpa [#allocation3], 0
    %13 = vsyncpa [#allocation6], 0
    %14 = vsyncpa [#allocation9], 0
    %15 = vsyncpa [#allocation4], 0
    // Predicated region
    $region2: #{tpu_custom_call.1} parent=1 // pred_check
      _
    $region3: #{tpu_custom_call.1} parent=1 // pred_check_branch
      %17 = sbr.rel (0) target = $region5
    $region4: #{tpu_custom_call.1} parent=1 // pred_region
      %s19 = ssub.s32 128, 128
      %20 = vsyncadd [#allocation3], %s19
      %s22 = sshll.u32 [#allocation2], 4
      %s23 = int_to_ptr.vmem [resolvable:$true] %s22
      %25 = dma.hbm_to_vmem [thread:$0]  %s0, 128, %s23, [#allocation3]
    $region5: #{tpu_custom_call.1} parent=1 // pred_fallthru
      _
    // Predicated region
    $region6: #{tpu_custom_call.1} parent=1 // pred_check
      _
    $region7: #{tpu_custom_call.1} parent=1 // pred_check_branch
      %27 = sbr.rel (0) target = $region9
    $region8: #{tpu_custom_call.1} parent=1 // pred_region
      %s29 = ssub.s32 4096, 4096
      %30 = vsyncadd [#allocation6], %s29
      %s31 = sshll.u32 [#allocation5], 4
      %s32 = int_to_ptr.vmem [resolvable:$true] %s31
      %37 = dma.hbm_to_vmem [thread:$0]  %s1, 4096, %s32, [#allocation6], 256, 256, 16
    $region9: #{tpu_custom_call.1} parent=1 // pred_fallthru
      _
    // Predicated region
    $region10: #{tpu_custom_call.1} parent=1 // pred_check
      _
    $region11: #{tpu_custom_call.1} parent=1 // pred_check_branch
      %39 = sbr.rel (0) target = $region13
    $region12: #{tpu_custom_call.1} parent=1 // pred_region
      %s41 = ssub.s32 4096, 4096
      %42 = vsyncadd [#allocation6], %s41
      %s43 = sshll.u32 [#allocation7], 4
      %s44 = int_to_ptr.vmem [resolvable:$true] %s43
      %49 = dma.hbm_to_vmem [thread:$0]  %s2, 4096, %s44, [#allocation6], 128, 128, 8
    $region13: #{tpu_custom_call.1} parent=1 // pred_fallthru
      _
    // Predicated region
    $region14: #{tpu_custom_call.1} parent=1 // pred_check
      _
    $region15: #{tpu_custom_call.1} parent=1 // pred_check_branch
      %51 = sbr.rel (0) target = $region17
    $region16: #{tpu_custom_call.1} parent=1 // pred_region
      %s53 = ssub.s32 2048, 2048
      %54 = vsyncadd [#allocation9], %s53
      %s55 = sshll.u32 [#allocation8], 4
      %s56 = int_to_ptr.vmem [resolvable:$true] %s55
      %61 = dma.hbm_to_vmem [thread:$0]  %s3, 2048, %s56, [#allocation9], 128, 128, 8
    $region17: #{tpu_custom_call.1} parent=1 // pred_fallthru
      _
    // Predicated region
    $region18: #{tpu_custom_call.1} parent=1 // pred_check
      _
    $region19: #{tpu_custom_call.1} parent=1 // pred_check_branch
      %63 = sbr.rel (0) target = $region21
    $region20: #{tpu_custom_call.1} parent=1 // pred_region
      _
    $region21: #{tpu_custom_call.1} parent=1 // pred_fallthru
      _
    // Predicated region
    $region22: #{tpu_custom_call.1} parent=1 // pred_check
      _
    $region23: #{tpu_custom_call.1} parent=1 // pred_check_branch
      %65 = sbr.rel (0) target = $region25
    $region24: #{tpu_custom_call.1} parent=1 // pred_region
      _
    $region25: #{tpu_custom_call.1} parent=1 // pred_fallthru
      _
    // Predicated region
    $region26: #{tpu_custom_call.1} parent=1 // pred_check
      _
    $region27: #{tpu_custom_call.1} parent=1 // pred_check_branch
      %67 = sbr.rel (0) target = $region29
    $region28: #{tpu_custom_call.1} parent=1 // pred_region
      _
    $region29: #{tpu_custom_call.1} parent=1 // pred_fallthru
      _
    // Predicated region
    $region30: #{tpu_custom_call.1} parent=1 // pred_check
      _
    $region31: #{tpu_custom_call.1} parent=1 // pred_check_branch
      %69 = sbr.rel (0) target = $region33
    $region32: #{tpu_custom_call.1} parent=1 // pred_region
      %70 = dma.done [#allocation3], 128
    $region33: #{tpu_custom_call.1} parent=1 // pred_fallthru
      _
    // Predicated region
    $region34: #{tpu_custom_call.1} parent=1 // pred_check
      _
    $region35: #{tpu_custom_call.1} parent=1 // pred_check_branch
      %72 = sbr.rel (0) target = $region37
    $region36: #{tpu_custom_call.1} parent=1 // pred_region
      %73 = dma.done [#allocation6], 4096
    $region37: #{tpu_custom_call.1} parent=1 // pred_fallthru
      _
    // Predicated region
    $region38: #{tpu_custom_call.1} parent=1 // pred_check
      _
    $region39: #{tpu_custom_call.1} parent=1 // pred_check_branch
      %75 = sbr.rel (0) target = $region41
    $region40: #{tpu_custom_call.1} parent=1 // pred_region
      %76 = dma.done [#allocation6], 4096
    $region41: #{tpu_custom_call.1} parent=1 // pred_fallthru
      _
    // Predicated region
    $region42: #{tpu_custom_call.1} parent=1 // pred_check
      _
    $region43: #{tpu_custom_call.1} parent=1 // pred_check_branch
      %78 = sbr.rel (0) target = $region45
    $region44: #{tpu_custom_call.1} parent=1 // pred_region
      %79 = dma.done [#allocation9], 2048
    $region45: #{tpu_custom_call.1} parent=1 // pred_fallthru
      _
    %v80 = vld [vmem:[#allocation2] sm:$0xff]
    %v81 = vld [vmem:[#allocation5] sm:$0xff]
    %v82 = vld [vmem:[#allocation5 + $0x8] sm:$0xff]
    %v83 = vld [vmem:[#allocation5 + $0x10] sm:$0xff]
    %v84 = vld [vmem:[#allocation5 + $0x18] sm:$0xff]
    %v85 = vld [vmem:[#allocation5 + $0x20] sm:$0xff]
    %v86 = vld [vmem:[#allocation5 + $0x28] sm:$0xff]
    %v87 = vld [vmem:[#allocation5 + $0x30] sm:$0xff]
    %v88 = vld [vmem:[#allocation5 + $0x38] sm:$0xff]
    %v89 = vld [vmem:[#allocation5 + $0x40] sm:$0xff]
    %v90 = vld [vmem:[#allocation5 + $0x48] sm:$0xff]
    %v91 = vld [vmem:[#allocation5 + $0x50] sm:$0xff]
    %v92 = vld [vmem:[#allocation5 + $0x58] sm:$0xff]
    %v93 = vld [vmem:[#allocation5 + $0x60] sm:$0xff]
    %v94 = vld [vmem:[#allocation5 + $0x68] sm:$0xff]
    %v95 = vld [vmem:[#allocation5 + $0x70] sm:$0xff]
    %v96 = vld [vmem:[#allocation5 + $0x78] sm:$0xff]
    %v97 = vld [vmem:[#allocation5 + $0x80] sm:$0xff]
    %v98 = vld [vmem:[#allocation5 + $0x88] sm:$0xff]
    %v99 = vld [vmem:[#allocation5 + $0x90] sm:$0xff]
    %v100 = vld [vmem:[#allocation5 + $0x98] sm:$0xff]
    %v101 = vld [vmem:[#allocation5 + $0xa0] sm:$0xff]
    %v102 = vld [vmem:[#allocation5 + $0xa8] sm:$0xff]
    %v103 = vld [vmem:[#allocation5 + $0xb0] sm:$0xff]
    %v104 = vld [vmem:[#allocation5 + $0xb8] sm:$0xff]
    %v105 = vld [vmem:[#allocation5 + $0xc0] sm:$0xff]
    %v106 = vld [vmem:[#allocation5 + $0xc8] sm:$0xff]
    %v107 = vld [vmem:[#allocation5 + $0xd0] sm:$0xff]
    %v108 = vld [vmem:[#allocation5 + $0xd8] sm:$0xff]
    %v109 = vld [vmem:[#allocation5 + $0xe0] sm:$0xff]
    %v110 = vld [vmem:[#allocation5 + $0xe8] sm:$0xff]
    %v111 = vld [vmem:[#allocation5 + $0xf0] sm:$0xff]
    %v112 = vld [vmem:[#allocation5 + $0xf8] sm:$0xff]
    %v113 = vld [vmem:[%s4] sm:$0x3]
    %v115 = vlaneseq
    %v116 = vshrl.u32 %v115, 7
    %v117 = vsub.s32 0, %v116
    %v118 = vrot.slane %v113, %v117
    %v119 = vlaneseq
    %v120 = vshrl.u32 %v119, 7
    %v121 = vsub.s32 1, %v120
    %v122 = vrot.slane %v113, %v121
    %125 = vmatprep.subr.mxu0 %v82
    %126 = vmatpush1.msra.mxu0 %v81
    %127 = vmatprep.subr.mxu0 %v84
    %128 = vmatpush1.msra.mxu0 %v83
    %129 = vmatprep.subr.mxu0 %v86
    %130 = vmatpush1.msra.mxu0 %v85
    %131 = vmatprep.subr.mxu0 %v88
    %132 = vmatpush1.msra.mxu0 %v87
    %133 = vmatprep.subr.mxu0 %v90
    %134 = vmatpush1.msra.mxu0 %v89
    %135 = vmatprep.subr.mxu0 %v92
    %136 = vmatpush1.msra.mxu0 %v91
    %137 = vmatprep.subr.mxu0 %v94
    %138 = vmatpush1.msra.mxu0 %v93
    %139 = vmatprep.subr.mxu0 %v96
    %140 = vmatpush1.msra.mxu0 %v95
    %141 = vmatprep.subr.mxu0 %v98
    %142 = vmatpush1.msra.mxu0 %v97
    %143 = vmatprep.subr.mxu0 %v100
    %144 = vmatpush1.msra.mxu0 %v99
    %145 = vmatprep.subr.mxu0 %v102
    %146 = vmatpush1.msra.mxu0 %v101
    %147 = vmatprep.subr.mxu0 %v104
    %148 = vmatpush1.msra.mxu0 %v103
    %149 = vmatprep.subr.mxu0 %v106
    %150 = vmatpush1.msra.mxu0 %v105
    %151 = vmatprep.subr.mxu0 %v108
    %152 = vmatpush1.msra.mxu0 %v107
    %153 = vmatprep.subr.mxu0 %v110
    %154 = vmatpush1.msra.mxu0 %v109
    %155 = vmatprep.subr.mxu0 %v112
    %156 = vmatpush1.msra.mxu0 %v111
    %157 = vmatprep.subr.mxu0 0.0
    %158 = vmatpush1.msra.mxu0 0.0
    %159 = vmatprep.subr.mxu0 0.0
    %160 = vmatpush1.msra.mxu0 0.0
    %161 = vmatprep.subr.mxu0 0.0
    %162 = vmatpush1.msra.mxu0 0.0
    %163 = vmatprep.subr.mxu0 0.0
    %164 = vmatpush1.msra.mxu0 0.0
    %165 = vmatprep.subr.mxu0 0.0
    %166 = vmatpush1.msra.mxu0 0.0
    %167 = vmatprep.subr.mxu0 0.0
    %168 = vmatpush1.msra.mxu0 0.0
    %169 = vmatprep.subr.mxu0 0.0
    %170 = vmatpush1.msra.mxu0 0.0
    %171 = vmatprep.subr.mxu0 0.0
    %172 = vmatpush1.msra.mxu0 0.0
    %173 = vmatprep.subr.mxu0 0.0
    %174 = vmatpush1.msra.mxu0 0.0
    %175 = vmatprep.subr.mxu0 0.0
    %176 = vmatpush1.msra.mxu0 0.0
    %177 = vmatprep.subr.mxu0 0.0
    %178 = vmatpush1.msra.mxu0 0.0
    %179 = vmatprep.subr.mxu0 0.0
    %180 = vmatpush1.msra.mxu0 0.0
    %181 = vmatprep.subr.mxu0 0.0
    %182 = vmatpush1.msra.mxu0 0.0
    %183 = vmatprep.subr.mxu0 0.0
    %184 = vmatpush1.msra.mxu0 0.0
    %185 = vmatprep.subr.mxu0 0.0
    %186 = vmatpush1.msra.mxu0 0.0
    %187 = vmatprep.subr.mxu0 0.0
    %188 = vmatpush1.msra.mxu0 0.0
    %189 = vmatprep.mubr.f32.mxu0 0.0
    %190 = vmatmul.mubr.f32.gmra.mrb[0].mxu0 %v80
    %v191 = vpop.f32.mrb[0].mxu0
    %v192 = vadd.f32 %v118, %v191
    %v193 = vpop.f32.mrb[0].mxu0
    %v194 = vadd.f32 %v122, %v193
    %195 = vdwg.mxu0
    %v196 = vmax.f32 %v192, 0.0
    %v197 = vmax.f32 %v194, 0.0
    %v198 = vld [vmem:[#allocation7] sm:$0xff]
    %v199 = vld [vmem:[#allocation7 + $0x8] sm:$0xff]
    %v200 = vld [vmem:[#allocation7 + $0x10] sm:$0xff]
    %v201 = vld [vmem:[#allocation7 + $0x18] sm:$0xff]
    %v202 = vld [vmem:[#allocation7 + $0x20] sm:$0xff]
    %v203 = vld [vmem:[#allocation7 + $0x28] sm:$0xff]
    %v204 = vld [vmem:[#allocation7 + $0x30] sm:$0xff]
    %v205 = vld [vmem:[#allocation7 + $0x38] sm:$0xff]
    %v206 = vld [vmem:[#allocation7 + $0x40] sm:$0xff]
    %v207 = vld [vmem:[#allocation7 + $0x48] sm:$0xff]
    %v208 = vld [vmem:[#allocation7 + $0x50] sm:$0xff]
    %v209 = vld [vmem:[#allocation7 + $0x58] sm:$0xff]
    %v210 = vld [vmem:[#allocation7 + $0x60] sm:$0xff]
    %v211 = vld [vmem:[#allocation7 + $0x68] sm:$0xff]
    %v212 = vld [vmem:[#allocation7 + $0x70] sm:$0xff]
    %v213 = vld [vmem:[#allocation7 + $0x78] sm:$0xff]
    %v214 = vld [vmem:[#allocation7 + $0x80] sm:$0xff]
    %v215 = vld [vmem:[#allocation7 + $0x88] sm:$0xff]
    %v216 = vld [vmem:[#allocation7 + $0x90] sm:$0xff]
    %v217 = vld [vmem:[#allocation7 + $0x98] sm:$0xff]
    %v218 = vld [vmem:[#allocation7 + $0xa0] sm:$0xff]
    %v219 = vld [vmem:[#allocation7 + $0xa8] sm:$0xff]
    %v220 = vld [vmem:[#allocation7 + $0xb0] sm:$0xff]
    %v221 = vld [vmem:[#allocation7 + $0xb8] sm:$0xff]
    %v222 = vld [vmem:[#allocation7 + $0xc0] sm:$0xff]
    %v223 = vld [vmem:[#allocation7 + $0xc8] sm:$0xff]
    %v224 = vld [vmem:[#allocation7 + $0xd0] sm:$0xff]
    %v225 = vld [vmem:[#allocation7 + $0xd8] sm:$0xff]
    %v226 = vld [vmem:[#allocation7 + $0xe0] sm:$0xff]
    %v227 = vld [vmem:[#allocation7 + $0xe8] sm:$0xff]
    %v228 = vld [vmem:[#allocation7 + $0xf0] sm:$0xff]
    %v229 = vld [vmem:[#allocation7 + $0xf8] sm:$0xff]
    %v230 = vld [vmem:[%s5] sm:$0x1]
    %v232 = vlaneseq
    %v233 = vshrl.u32 %v232, 7
    %v234 = vsub.s32 0, %v233
    %v235 = vrot.slane %v230, %v234
    %237 = vmatprep.subr.mxu0 0.0
    %238 = vmatpush1.msra.mxu0 %v198
    %239 = vmatprep.subr.mxu0 0.0
    %240 = vmatpush1.msra.mxu0 %v199
    %241 = vmatprep.subr.mxu0 0.0
    %242 = vmatpush1.msra.mxu0 %v200
    %243 = vmatprep.subr.mxu0 0.0
    %244 = vmatpush1.msra.mxu0 %v201
    %245 = vmatprep.subr.mxu0 0.0
    %246 = vmatpush1.msra.mxu0 %v202
    %247 = vmatprep.subr.mxu0 0.0
    %248 = vmatpush1.msra.mxu0 %v203
    %249 = vmatprep.subr.mxu0 0.0
    %250 = vmatpush1.msra.mxu0 %v204
    %251 = vmatprep.subr.mxu0 0.0
    %252 = vmatpush1.msra.mxu0 %v205
    %253 = vmatprep.subr.mxu0 0.0
    %254 = vmatpush1.msra.mxu0 %v206
    %255 = vmatprep.subr.mxu0 0.0
    %256 = vmatpush1.msra.mxu0 %v207
    %257 = vmatprep.subr.mxu0 0.0
    %258 = vmatpush1.msra.mxu0 %v208
    %259 = vmatprep.subr.mxu0 0.0
    %260 = vmatpush1.msra.mxu0 %v209
    %261 = vmatprep.subr.mxu0 0.0
    %262 = vmatpush1.msra.mxu0 %v210
    %263 = vmatprep.subr.mxu0 0.0
    %264 = vmatpush1.msra.mxu0 %v211
    %265 = vmatprep.subr.mxu0 0.0
    %266 = vmatpush1.msra.mxu0 %v212
    %267 = vmatprep.subr.mxu0 0.0
    %268 = vmatpush1.msra.mxu0 %v213
    %269 = vmatprep.subr.mxu0 0.0
    %270 = vmatpush1.msra.mxu0 %v214
    %271 = vmatprep.subr.mxu0 0.0
    %272 = vmatpush1.msra.mxu0 %v215
    %273 = vmatprep.subr.mxu0 0.0
    %274 = vmatpush1.msra.mxu0 %v216
    %275 = vmatprep.subr.mxu0 0.0
    %276 = vmatpush1.msra.mxu0 %v217
    %277 = vmatprep.subr.mxu0 0.0
    %278 = vmatpush1.msra.mxu0 %v218
    %279 = vmatprep.subr.mxu0 0.0
    %280 = vmatpush1.msra.mxu0 %v219
    %281 = vmatprep.subr.mxu0 0.0
    %282 = vmatpush1.msra.mxu0 %v220
    %283 = vmatprep.subr.mxu0 0.0
    %284 = vmatpush1.msra.mxu0 %v221
    %285 = vmatprep.subr.mxu0 0.0
    %286 = vmatpush1.msra.mxu0 %v222
    %287 = vmatprep.subr.mxu0 0.0
    %288 = vmatpush1.msra.mxu0 %v223
    %289 = vmatprep.subr.mxu0 0.0
    %290 = vmatpush1.msra.mxu0 %v224
    %291 = vmatprep.subr.mxu0 0.0
    %292 = vmatpush1.msra.mxu0 %v225
    %293 = vmatprep.subr.mxu0 0.0
    %294 = vmatpush1.msra.mxu0 %v226
    %295 = vmatprep.subr.mxu0 0.0
    %296 = vmatpush1.msra.mxu0 %v227
    %297 = vmatprep.subr.mxu0 0.0
    %298 = vmatpush1.msra.mxu0 %v228
    %299 = vmatprep.subr.mxu0 0.0
    %300 = vmatpush1.msra.mxu0 %v229
    %301 = vmatprep.mubr.f32.mxu0 %v197
    %302 = vmatmul.mubr.f32.gmra.mrb[0].mxu0 %v196
    %v303 = vpop.f32.mrb[0].mxu0
    %v304 = vadd.f32 %v235, %v303
    %v305 = vpop.f32.mrb[0].mxu0
    %306 = vdwg.mxu0
    %v307 = vmax.f32 %v304, 0.0
    %v308 = vld [vmem:[#allocation8] sm:$0xff]
    %v309 = vld [vmem:[#allocation8 + $0x8] sm:$0xff]
    %v310 = vld [vmem:[#allocation8 + $0x10] sm:$0xff]
    %v311 = vld [vmem:[#allocation8 + $0x18] sm:$0xff]
    %v312 = vld [vmem:[#allocation8 + $0x20] sm:$0xff]
    %v313 = vld [vmem:[#allocation8 + $0x28] sm:$0xff]
    %v314 = vld [vmem:[#allocation8 + $0x30] sm:$0xff]
    %v315 = vld [vmem:[#allocation8 + $0x38] sm:$0xff]
    %v316 = vld [vmem:[#allocation8 + $0x40] sm:$0xff]
    %v317 = vld [vmem:[#allocation8 + $0x48] sm:$0xff]
    %v318 = vld [vmem:[#allocation8 + $0x50] sm:$0xff]
    %v319 = vld [vmem:[#allocation8 + $0x58] sm:$0xff]
    %v320 = vld [vmem:[#allocation8 + $0x60] sm:$0xff]
    %v321 = vld [vmem:[#allocation8 + $0x68] sm:$0xff]
    %v322 = vld [vmem:[#allocation8 + $0x70] sm:$0xff]
    %v323 = vld [vmem:[#allocation8 + $0x78] sm:$0xff]
    %v324 = vld [vmem:[%s6] sm:$0x1]
    %v326 = vlaneseq
    %v327 = vshrl.u32 %v326, 7
    %v328 = vsub.s32 0, %v327
    %v329 = vrot.slane %v324, %v328
    %331 = vmatprep.subr.mxu0 0.0
    %332 = vmatpush1.msra.mxu0 %v308
    %333 = vmatprep.subr.mxu0 0.0
    %334 = vmatpush1.msra.mxu0 %v309
    %335 = vmatprep.subr.mxu0 0.0
    %336 = vmatpush1.msra.mxu0 %v310
    %337 = vmatprep.subr.mxu0 0.0
    %338 = vmatpush1.msra.mxu0 %v311
    %339 = vmatprep.subr.mxu0 0.0
    %340 = vmatpush1.msra.mxu0 %v312
    %341 = vmatprep.subr.mxu0 0.0
    %342 = vmatpush1.msra.mxu0 %v313
    %343 = vmatprep.subr.mxu0 0.0
    %344 = vmatpush1.msra.mxu0 %v314
    %345 = vmatprep.subr.mxu0 0.0
    %346 = vmatpush1.msra.mxu0 %v315
    %347 = vmatprep.subr.mxu0 0.0
    %348 = vmatpush1.msra.mxu0 %v316
    %349 = vmatprep.subr.mxu0 0.0
    %350 = vmatpush1.msra.mxu0 %v317
    %351 = vmatprep.subr.mxu0 0.0
    %352 = vmatpush1.msra.mxu0 %v318
    %353 = vmatprep.subr.mxu0 0.0
    %354 = vmatpush1.msra.mxu0 %v319
    %355 = vmatprep.subr.mxu0 0.0
    %356 = vmatpush1.msra.mxu0 %v320
    %357 = vmatprep.subr.mxu0 0.0
    %358 = vmatpush1.msra.mxu0 %v321
    %359 = vmatprep.subr.mxu0 0.0
    %360 = vmatpush1.msra.mxu0 %v322
    %361 = vmatprep.subr.mxu0 0.0
    %362 = vmatpush1.msra.mxu0 %v323
    %363 = vmatprep.subr.mxu0 0.0
    %364 = vmatpush1.msra.mxu0 0.0
    %365 = vmatprep.subr.mxu0 0.0
    %366 = vmatpush1.msra.mxu0 0.0
    %367 = vmatprep.subr.mxu0 0.0
    %368 = vmatpush1.msra.mxu0 0.0
    %369 = vmatprep.subr.mxu0 0.0
    %370 = vmatpush1.msra.mxu0 0.0
    %371 = vmatprep.subr.mxu0 0.0
    %372 = vmatpush1.msra.mxu0 0.0
    %373 = vmatprep.subr.mxu0 0.0
    %374 = vmatpush1.msra.mxu0 0.0
    %375 = vmatprep.subr.mxu0 0.0
    %376 = vmatpush1.msra.mxu0 0.0
    %377 = vmatprep.subr.mxu0 0.0
    %378 = vmatpush1.msra.mxu0 0.0
    %379 = vmatprep.subr.mxu0 0.0
    %380 = vmatpush1.msra.mxu0 0.0
    %381 = vmatprep.subr.mxu0 0.0
    %382 = vmatpush1.msra.mxu0 0.0
    %383 = vmatprep.subr.mxu0 0.0
    %384 = vmatpush1.msra.mxu0 0.0
    %385 = vmatprep.subr.mxu0 0.0
    %386 = vmatpush1.msra.mxu0 0.0
    %387 = vmatprep.subr.mxu0 0.0
    %388 = vmatpush1.msra.mxu0 0.0
    %389 = vmatprep.subr.mxu0 0.0
    %390 = vmatpush1.msra.mxu0 0.0
    %391 = vmatprep.subr.mxu0 0.0
    %392 = vmatpush1.msra.mxu0 0.0
    %393 = vmatprep.subr.mxu0 0.0
    %394 = vmatpush1.msra.mxu0 0.0
    %395 = vmatprep.mubr.f32.mxu0 0.0
    %396 = vmatmul.mubr.f32.gmra.mrb[0].mxu0 %v307
    %v397 = vpop.f32.mrb[0].mxu0
    %v398 = vadd.f32 %v329, %v397
    %v399 = vpop.f32.mrb[0].mxu0
    %400 = vdwg.mxu0
    %401 = vst [vmem:[#allocation10] sm:$0xff] %v398
    // Predicated region
    $region46: #{tpu_custom_call.1} parent=1 // pred_check
      _
    $region47: #{tpu_custom_call.1} parent=1 // pred_check_branch
      %403 = sbr.rel (0) target = $region49
    $region48: #{tpu_custom_call.1} parent=1 // pred_region
      %s405 = ssub.s32 128, 128
      %406 = vsyncadd [#allocation4], %s405
      %s408 = sshll.u32 [#allocation10], 4
      %s409 = int_to_ptr.vmem [resolvable:$true] %s408
      %411 = dma.vmem_to_hbm [thread:$0]  %s409, 128, %s7, [#allocation4]
    $region49: #{tpu_custom_call.1} parent=1 // pred_fallthru
      _
    // Predicated region
    $region50: #{tpu_custom_call.1} parent=1 // pred_check
      _
    $region51: #{tpu_custom_call.1} parent=1 // pred_check_branch
      %413 = sbr.rel (0) target = $region53
    $region52: #{tpu_custom_call.1} parent=1 // pred_region
      %414 = dma.done [#allocation4], 128
    $region53: #{tpu_custom_call.1} parent=1 // pred_fallthru
      _
    %415 = vsyncpa [#allocation3], 1
    %416 = vsyncpa [#allocation6], 1
    %417 = vsyncpa [#allocation9], 1
    %418 = vsyncpa [#allocation4], 1

// kernel: tpu_custom_call.1
$region0: #{tpu_custom_call.1}
  #allocation0 [shape = 'u32[]', space=smem, size = 0x4, offset = 0x4, fixed_abs, tag = 'smem constant byte address 0x4 - core index']
  #allocation1 [shape = 'u32[144,128]{1,0:T(1,128)}', space=vmem, size = 0x12000, scoped, tag = 'internal scratch']
  %s0 = inlined_call_operand.hbm [shape: f32[8,128], index: 0, kind: input, shape index: {}]
  %s1 = inlined_call_operand.hbm [shape: f32[128,256], index: 1, kind: input, shape index: {}]
  %s2 = inlined_call_operand.hbm [shape: f32[256,128], index: 2, kind: input, shape index: {}]
  %s3 = inlined_call_operand.hbm [shape: f32[128,128], index: 3, kind: input, shape index: {}]
  %s4 = inlined_call_operand.vmem [shape: f32[1,256], index: 4, kind: input, shape index: {}]
  %s5 = inlined_call_operand.vmem [shape: f32[1,128], index: 5, kind: input, shape index: {}]
  %s6 = inlined_call_operand.vmem [shape: f32[1,128], index: 6, kind: input, shape index: {}]
  %s7 = inlined_call_operand.hbm [shape: f32[8,128], index: 7, kind: output, shape index: {}]
  %s8 = sld [smem:[#allocation0]]
  $region54: #{tpu_custom_call.1} parent=0
    _
  %s10 = ssub.s32 1, %s8
  %s11 = scalar_select 0, %s10, %s8
  $region1: #{tpu_custom_call.1} parent=0
    #allocation2 [shape = 'u8[4096]{0}', space=vmem, size = 0x1000, scoped, tag = 'input window, operand 0, single buffered']
    #allocation3 [shape = 's32[1]{0}', space=sflag, size = 0x4, scoped, tag = 'scoped memory for tpu_custom_call.1']
    #allocation4 [shape = 's32[1]{0}', space=sflag, size = 0x4, scoped, tag = 'scoped memory for tpu_custom_call.1']
    #allocation5 [shape = 'u8[131072]{0}', space=vmem, size = 0x20000, scoped, tag = 'input window, operand 1, single buffered']
    #allocation6 [shape = 's32[1]{0}', space=sflag, size = 0x4, scoped, tag = 'scoped memory for tpu_custom_call.1']
    #allocation7 [shape = 'u8[131072]{0}', space=vmem, size = 0x20000, scoped, tag = 'input window, operand 2, single buffered']
    #allocation8 [shape = 'u8[65536]{0}', space=vmem, size = 0x10000, scoped, tag = 'input window, operand 3, single buffered']
    #allocation9 [shape = 's32[1]{0}', space=sflag, size = 0x4, scoped, tag = 'scoped memory for tpu_custom_call.1']
    #allocation10 [shape = 'u8[4096]{0}', space=vmem, size = 0x1000, scoped, tag = 'output window, operand 0, single buffered']
    %12 = vsyncpa [#allocation3], 0
    %13 = vsyncpa [#allocation6], 0
    %14 = vsyncpa [#allocation9], 0
    %15 = vsyncpa [#allocation4], 0
    // Predicated region
    $region2: #{tpu_custom_call.1} parent=1 // pred_check
      _
    $region3: #{tpu_custom_call.1} parent=1 // pred_check_branch
      %17 = sbr.rel (0) target = $region5
    $region4: #{tpu_custom_call.1} parent=1 // pred_region
      %s19 = ssub.s32 128, 128
      %20 = vsyncadd [#allocation3], %s19
      %s22 = sshll.u32 [#allocation2], 4
      %s23 = int_to_ptr.vmem [resolvable:$true] %s22
      %25 = dma.hbm_to_vmem [thread:$0]  %s0, 128, %s23, [#allocation3]
    $region5: #{tpu_custom_call.1} parent=1 // pred_fallthru
      _
    // Predicated region
    $region6: #{tpu_custom_call.1} parent=1 // pred_check
      _
    $region7: #{tpu_custom_call.1} parent=1 // pred_check_branch
      %27 = sbr.rel (0) target = $region9
    $region8: #{tpu_custom_call.1} parent=1 // pred_region
      %s29 = ssub.s32 4096, 4096
      %30 = vsyncadd [#allocation6], %s29
      %s31 = sshll.u32 [#allocation5], 4
      %s32 = int_to_ptr.vmem [resolvable:$true] %s31
      %37 = dma.hbm_to_vmem [thread:$0]  %s1, 4096, %s32, [#allocation6], 256, 256, 16
    $region9: #{tpu_custom_call.1} parent=1 // pred_fallthru
      _
    // Predicated region
    $region10: #{tpu_custom_call.1} parent=1 // pred_check
      _
    $region11: #{tpu_custom_call.1} parent=1 // pred_check_branch
      %39 = sbr.rel (0) target = $region13
    $region12: #{tpu_custom_call.1} parent=1 // pred_region
      %s41 = ssub.s32 4096, 4096
      %42 = vsyncadd [#allocation6], %s41
      %s43 = sshll.u32 [#allocation7], 4
      %s44 = int_to_ptr.vmem [resolvable:$true] %s43
      %49 = dma.hbm_to_vmem [thread:$0]  %s2, 4096, %s44, [#allocation6], 128, 128, 8
    $region13: #{tpu_custom_call.1} parent=1 // pred_fallthru
      _
    // Predicated region
    $region14: #{tpu_custom_call.1} parent=1 // pred_check
      _
    $region15: #{tpu_custom_call.1} parent=1 // pred_check_branch
      %51 = sbr.rel (0) target = $region17
    $region16: #{tpu_custom_call.1} parent=1 // pred_region
      %s53 = ssub.s32 2048, 2048
      %54 = vsyncadd [#allocation9], %s53
      %s55 = sshll.u32 [#allocation8], 4
      %s56 = int_to_ptr.vmem [resolvable:$true] %s55
      %61 = dma.hbm_to_vmem [thread:$0]  %s3, 2048, %s56, [#allocation9], 128, 128, 8
    $region17: #{tpu_custom_call.1} parent=1 // pred_fallthru
      _
    // Predicated region
    $region18: #{tpu_custom_call.1} parent=1 // pred_check
      _
    $region19: #{tpu_custom_call.1} parent=1 // pred_check_branch
      %63 = sbr.rel (0) target = $region21
    $region20: #{tpu_custom_call.1} parent=1 // pred_region
      _
    $region21: #{tpu_custom_call.1} parent=1 // pred_fallthru
      _
    // Predicated region
    $region22: #{tpu_custom_call.1} parent=1 // pred_check
      _
    $region23: #{tpu_custom_call.1} parent=1 // pred_check_branch
      %65 = sbr.rel (0) target = $region25
    $region24: #{tpu_custom_call.1} parent=1 // pred_region
      _
    $region25: #{tpu_custom_call.1} parent=1 // pred_fallthru
      _
    // Predicated region
    $region26: #{tpu_custom_call.1} parent=1 // pred_check
      _
    $region27: #{tpu_custom_call.1} parent=1 // pred_check_branch
      %67 = sbr.rel (0) target = $region29
    $region28: #{tpu_custom_call.1} parent=1 // pred_region
      _
    $region29: #{tpu_custom_call.1} parent=1 // pred_fallthru
      _
    // Predicated region
    $region30: #{tpu_custom_call.1} parent=1 // pred_check
      _
    $region31: #{tpu_custom_call.1} parent=1 // pred_check_branch
      %69 = sbr.rel (0) target = $region33
    $region32: #{tpu_custom_call.1} parent=1 // pred_region
      %70 = dma.done [#allocation3], 128
    $region33: #{tpu_custom_call.1} parent=1 // pred_fallthru
      _
    // Predicated region
    $region34: #{tpu_custom_call.1} parent=1 // pred_check
      _
    $region35: #{tpu_custom_call.1} parent=1 // pred_check_branch
      %72 = sbr.rel (0) target = $region37
    $region36: #{tpu_custom_call.1} parent=1 // pred_region
      %73 = dma.done [#allocation6], 4096
    $region37: #{tpu_custom_call.1} parent=1 // pred_fallthru
      _
    // Predicated region
    $region38: #{tpu_custom_call.1} parent=1 // pred_check
      _
    $region39: #{tpu_custom_call.1} parent=1 // pred_check_branch
      %75 = sbr.rel (0) target = $region41
    $region40: #{tpu_custom_call.1} parent=1 // pred_region
      %76 = dma.done [#allocation6], 4096
    $region41: #{tpu_custom_call.1} parent=1 // pred_fallthru
      _
    // Predicated region
    $region42: #{tpu_custom_call.1} parent=1 // pred_check
      _
    $region43: #{tpu_custom_call.1} parent=1 // pred_check_branch
      %78 = sbr.rel (0) target = $region45
    $region44: #{tpu_custom_call.1} parent=1 // pred_region
      %79 = dma.done [#allocation9], 2048
    $region45: #{tpu_custom_call.1} parent=1 // pred_fallthru
      _
    %v80 = vld [vmem:[#allocation2] sm:$0xff]
    %v81 = vld [vmem:[#allocation5] sm:$0xff]
    %v82 = vld [vmem:[#allocation5 + $0x8] sm:$0xff]
    %v83 = vld [vmem:[#allocation5 + $0x10] sm:$0xff]
    %v84 = vld [vmem:[#allocation5 + $0x18] sm:$0xff]
    %v85 = vld [vmem:[#allocation5 + $0x20] sm:$0xff]
    %v86 = vld [vmem:[#allocation5 + $0x28] sm:$0xff]
    %v87 = vld [vmem:[#allocation5 + $0x30] sm:$0xff]
    %v88 = vld [vmem:[#allocation5 + $0x38] sm:$0xff]
    %v89 = vld [vmem:[#allocation5 + $0x40] sm:$0xff]
    %v90 = vld [vmem:[#allocation5 + $0x48] sm:$0xff]
    %v91 = vld [vmem:[#allocation5 + $0x50] sm:$0xff]
    %v92 = vld [vmem:[#allocation5 + $0x58] sm:$0xff]
    %v93 = vld [vmem:[#allocation5 + $0x60] sm:$0xff]
    %v94 = vld [vmem:[#allocation5 + $0x68] sm:$0xff]
    %v95 = vld [vmem:[#allocation5 + $0x70] sm:$0xff]
    %v96 = vld [vmem:[#allocation5 + $0x78] sm:$0xff]
    %v97 = vld [vmem:[#allocation5 + $0x80] sm:$0xff]
    %v98 = vld [vmem:[#allocation5 + $0x88] sm:$0xff]
    %v99 = vld [vmem:[#allocation5 + $0x90] sm:$0xff]
    %v100 = vld [vmem:[#allocation5 + $0x98] sm:$0xff]
    %v101 = vld [vmem:[#allocation5 + $0xa0] sm:$0xff]
    %v102 = vld [vmem:[#allocation5 + $0xa8] sm:$0xff]
    %v103 = vld [vmem:[#allocation5 + $0xb0] sm:$0xff]
    %v104 = vld [vmem:[#allocation5 + $0xb8] sm:$0xff]
    %v105 = vld [vmem:[#allocation5 + $0xc0] sm:$0xff]
    %v106 = vld [vmem:[#allocation5 + $0xc8] sm:$0xff]
    %v107 = vld [vmem:[#allocation5 + $0xd0] sm:$0xff]
    %v108 = vld [vmem:[#allocation5 + $0xd8] sm:$0xff]
    %v109 = vld [vmem:[#allocation5 + $0xe0] sm:$0xff]
    %v110 = vld [vmem:[#allocation5 + $0xe8] sm:$0xff]
    %v111 = vld [vmem:[#allocation5 + $0xf0] sm:$0xff]
    %v112 = vld [vmem:[#allocation5 + $0xf8] sm:$0xff]
    %v113 = vld [vmem:[%s4] sm:$0x3]
    %v115 = vlaneseq
    %v116 = vshrl.u32 %v115, 7
    %v117 = vsub.s32 0, %v116
    %v118 = vrot.slane %v113, %v117
    %v119 = vlaneseq
    %v120 = vshrl.u32 %v119, 7
    %v121 = vsub.s32 1, %v120
    %v122 = vrot.slane %v113, %v121
    %125 = vmatprep.subr.mxu0 %v82
    %126 = vmatpush1.msra.mxu0 %v81
    %127 = vmatprep.subr.mxu0 %v84
    %128 = vmatpush1.msra.mxu0 %v83
    %129 = vmatprep.subr.mxu0 %v86
    %130 = vmatpush1.msra.mxu0 %v85
    %131 = vmatprep.subr.mxu0 %v88
    %132 = vmatpush1.msra.mxu0 %v87
    %133 = vmatprep.subr.mxu0 %v90
    %134 = vmatpush1.msra.mxu0 %v89
    %135 = vmatprep.subr.mxu0 %v92
    %136 = vmatpush1.msra.mxu0 %v91
    %137 = vmatprep.subr.mxu0 %v94
    %138 = vmatpush1.msra.mxu0 %v93
    %139 = vmatprep.subr.mxu0 %v96
    %140 = vmatpush1.msra.mxu0 %v95
    %141 = vmatprep.subr.mxu0 %v98
    %142 = vmatpush1.msra.mxu0 %v97
    %143 = vmatprep.subr.mxu0 %v100
    %144 = vmatpush1.msra.mxu0 %v99
    %145 = vmatprep.subr.mxu0 %v102
    %146 = vmatpush1.msra.mxu0 %v101
    %147 = vmatprep.subr.mxu0 %v104
    %148 = vmatpush1.msra.mxu0 %v103
    %149 = vmatprep.subr.mxu0 %v106
    %150 = vmatpush1.msra.mxu0 %v105
    %151 = vmatprep.subr.mxu0 %v108
    %152 = vmatpush1.msra.mxu0 %v107
    %153 = vmatprep.subr.mxu0 %v110
    %154 = vmatpush1.msra.mxu0 %v109
    %155 = vmatprep.subr.mxu0 %v112
    %156 = vmatpush1.msra.mxu0 %v111
    %157 = vmatprep.subr.mxu0 0.0
    %158 = vmatpush1.msra.mxu0 0.0
    %159 = vmatprep.subr.mxu0 0.0
    %160 = vmatpush1.msra.mxu0 0.0
    %161 = vmatprep.subr.mxu0 0.0
    %162 = vmatpush1.msra.mxu0 0.0
    %163 = vmatprep.subr.mxu0 0.0
    %164 = vmatpush1.msra.mxu0 0.0
    %165 = vmatprep.subr.mxu0 0.0
    %166 = vmatpush1.msra.mxu0 0.0
    %167 = vmatprep.subr.mxu0 0.0
    %168 = vmatpush1.msra.mxu0 0.0
    %169 = vmatprep.subr.mxu0 0.0
    %170 = vmatpush1.msra.mxu0 0.0
    %171 = vmatprep.subr.mxu0 0.0
    %172 = vmatpush1.msra.mxu0 0.0
    %173 = vmatprep.subr.mxu0 0.0
    %174 = vmatpush1.msra.mxu0 0.0
    %175 = vmatprep.subr.mxu0 0.0
    %176 = vmatpush1.msra.mxu0 0.0
    %177 = vmatprep.subr.mxu0 0.0
    %178 = vmatpush1.msra.mxu0 0.0
    %179 = vmatprep.subr.mxu0 0.0
    %180 = vmatpush1.msra.mxu0 0.0
    %181 = vmatprep.subr.mxu0 0.0
    %182 = vmatpush1.msra.mxu0 0.0
    %183 = vmatprep.subr.mxu0 0.0
    %184 = vmatpush1.msra.mxu0 0.0
    %185 = vmatprep.subr.mxu0 0.0
    %186 = vmatpush1.msra.mxu0 0.0
    %187 = vmatprep.subr.mxu0 0.0
    %188 = vmatpush1.msra.mxu0 0.0
    %189 = vmatprep.mubr.f32.mxu0 0.0
    %190 = vmatmul.mubr.f32.gmra.mrb[0].mxu0 %v80
    %v191 = vpop.f32.mrb[0].mxu0
    %v192 = vadd.f32 %v118, %v191
    %v193 = vpop.f32.mrb[0].mxu0
    %v194 = vadd.f32 %v122, %v193
    %195 = vdwg.mxu0
    %v196 = vmax.f32 %v192, 0.0
    %v197 = vmax.f32 %v194, 0.0
    %v198 = vld [vmem:[#allocation7] sm:$0xff]
    %v199 = vld [vmem:[#allocation7 + $0x8] sm:$0xff]
    %v200 = vld [vmem:[#allocation7 + $0x10] sm:$0xff]
    %v201 = vld [vmem:[#allocation7 + $0x18] sm:$0xff]
    %v202 = vld [vmem:[#allocation7 + $0x20] sm:$0xff]
    %v203 = vld [vmem:[#allocation7 + $0x28] sm:$0xff]
    %v204 = vld [vmem:[#allocation7 + $0x30] sm:$0xff]
    %v205 = vld [vmem:[#allocation7 + $0x38] sm:$0xff]
    %v206 = vld [vmem:[#allocation7 + $0x40] sm:$0xff]
    %v207 = vld [vmem:[#allocation7 + $0x48] sm:$0xff]
    %v208 = vld [vmem:[#allocation7 + $0x50] sm:$0xff]
    %v209 = vld [vmem:[#allocation7 + $0x58] sm:$0xff]
    %v210 = vld [vmem:[#allocation7 + $0x60] sm:$0xff]
    %v211 = vld [vmem:[#allocation7 + $0x68] sm:$0xff]
    %v212 = vld [vmem:[#allocation7 + $0x70] sm:$0xff]
    %v213 = vld [vmem:[#allocation7 + $0x78] sm:$0xff]
    %v214 = vld [vmem:[#allocation7 + $0x80] sm:$0xff]
    %v215 = vld [vmem:[#allocation7 + $0x88] sm:$0xff]
    %v216 = vld [vmem:[#allocation7 + $0x90] sm:$0xff]
    %v217 = vld [vmem:[#allocation7 + $0x98] sm:$0xff]
    %v218 = vld [vmem:[#allocation7 + $0xa0] sm:$0xff]
    %v219 = vld [vmem:[#allocation7 + $0xa8] sm:$0xff]
    %v220 = vld [vmem:[#allocation7 + $0xb0] sm:$0xff]
    %v221 = vld [vmem:[#allocation7 + $0xb8] sm:$0xff]
    %v222 = vld [vmem:[#allocation7 + $0xc0] sm:$0xff]
    %v223 = vld [vmem:[#allocation7 + $0xc8] sm:$0xff]
    %v224 = vld [vmem:[#allocation7 + $0xd0] sm:$0xff]
    %v225 = vld [vmem:[#allocation7 + $0xd8] sm:$0xff]
    %v226 = vld [vmem:[#allocation7 + $0xe0] sm:$0xff]
    %v227 = vld [vmem:[#allocation7 + $0xe8] sm:$0xff]
    %v228 = vld [vmem:[#allocation7 + $0xf0] sm:$0xff]
    %v229 = vld [vmem:[#allocation7 + $0xf8] sm:$0xff]
    %v230 = vld [vmem:[%s5] sm:$0x1]
    %v232 = vlaneseq
    %v233 = vshrl.u32 %v232, 7
    %v234 = vsub.s32 0, %v233
    %v235 = vrot.slane %v230, %v234
    %237 = vmatprep.subr.mxu0 0.0
    %238 = vmatpush1.msra.mxu0 %v198
    %239 = vmatprep.subr.mxu0 0.0
    %240 = vmatpush1.msra.mxu0 %v199
    %241 = vmatprep.subr.mxu0 0.0
    %242 = vmatpush1.msra.mxu0 %v200
    %243 = vmatprep.subr.mxu0 0.0
    %244 = vmatpush1.msra.mxu0 %v201
    %245 = vmatprep.subr.mxu0 0.0
    %246 = vmatpush1.msra.mxu0 %v202
    %247 = vmatprep.subr.mxu0 0.0
    %248 = vmatpush1.msra.mxu0 %v203
    %249 = vmatprep.subr.mxu0 0.0
    %250 = vmatpush1.msra.mxu0 %v204
    %251 = vmatprep.subr.mxu0 0.0
    %252 = vmatpush1.msra.mxu0 %v205
    %253 = vmatprep.subr.mxu0 0.0
    %254 = vmatpush1.msra.mxu0 %v206
    %255 = vmatprep.subr.mxu0 0.0
    %256 = vmatpush1.msra.mxu0 %v207
    %257 = vmatprep.subr.mxu0 0.0
    %258 = vmatpush1.msra.mxu0 %v208
    %259 = vmatprep.subr.mxu0 0.0
    %260 = vmatpush1.msra.mxu0 %v209
    %261 = vmatprep.subr.mxu0 0.0
    %262 = vmatpush1.msra.mxu0 %v210
    %263 = vmatprep.subr.mxu0 0.0
    %264 = vmatpush1.msra.mxu0 %v211
    %265 = vmatprep.subr.mxu0 0.0
    %266 = vmatpush1.msra.mxu0 %v212
    %267 = vmatprep.subr.mxu0 0.0
    %268 = vmatpush1.msra.mxu0 %v213
    %269 = vmatprep.subr.mxu0 0.0
    %270 = vmatpush1.msra.mxu0 %v214
    %271 = vmatprep.subr.mxu0 0.0
    %272 = vmatpush1.msra.mxu0 %v215
    %273 = vmatprep.subr.mxu0 0.0
    %274 = vmatpush1.msra.mxu0 %v216
    %275 = vmatprep.subr.mxu0 0.0
    %276 = vmatpush1.msra.mxu0 %v217
    %277 = vmatprep.subr.mxu0 0.0
    %278 = vmatpush1.msra.mxu0 %v218
    %279 = vmatprep.subr.mxu0 0.0
    %280 = vmatpush1.msra.mxu0 %v219
    %281 = vmatprep.subr.mxu0 0.0
    %282 = vmatpush1.msra.mxu0 %v220
    %283 = vmatprep.subr.mxu0 0.0
    %284 = vmatpush1.msra.mxu0 %v221
    %285 = vmatprep.subr.mxu0 0.0
    %286 = vmatpush1.msra.mxu0 %v222
    %287 = vmatprep.subr.mxu0 0.0
    %288 = vmatpush1.msra.mxu0 %v223
    %289 = vmatprep.subr.mxu0 0.0
    %290 = vmatpush1.msra.mxu0 %v224
    %291 = vmatprep.subr.mxu0 0.0
    %292 = vmatpush1.msra.mxu0 %v225
    %293 = vmatprep.subr.mxu0 0.0
    %294 = vmatpush1.msra.mxu0 %v226
    %295 = vmatprep.subr.mxu0 0.0
    %296 = vmatpush1.msra.mxu0 %v227
    %297 = vmatprep.subr.mxu0 0.0
    %298 = vmatpush1.msra.mxu0 %v228
    %299 = vmatprep.subr.mxu0 0.0
    %300 = vmatpush1.msra.mxu0 %v229
    %301 = vmatprep.mubr.f32.mxu0 %v197
    %302 = vmatmul.mubr.f32.gmra.mrb[0].mxu0 %v196
    %v303 = vpop.f32.mrb[0].mxu0
    %v304 = vadd.f32 %v235, %v303
    %v305 = vpop.f32.mrb[0].mxu0
    %306 = vdwg.mxu0
    %v307 = vmax.f32 %v304, 0.0
    %v308 = vld [vmem:[#allocation8] sm:$0xff]
    %v309 = vld [vmem:[#allocation8 + $0x8] sm:$0xff]
    %v310 = vld [vmem:[#allocation8 + $0x10] sm:$0xff]
    %v311 = vld [vmem:[#allocation8 + $0x18] sm:$0xff]
    %v312 = vld [vmem:[#allocation8 + $0x20] sm:$0xff]
    %v313 = vld [vmem:[#allocation8 + $0x28] sm:$0xff]
    %v314 = vld [vmem:[#allocation8 + $0x30] sm:$0xff]
    %v315 = vld [vmem:[#allocation8 + $0x38] sm:$0xff]
    %v316 = vld [vmem:[#allocation8 + $0x40] sm:$0xff]
    %v317 = vld [vmem:[#allocation8 + $0x48] sm:$0xff]
    %v318 = vld [vmem:[#allocation8 + $0x50] sm:$0xff]
    %v319 = vld [vmem:[#allocation8 + $0x58] sm:$0xff]
    %v320 = vld [vmem:[#allocation8 + $0x60] sm:$0xff]
    %v321 = vld [vmem:[#allocation8 + $0x68] sm:$0xff]
    %v322 = vld [vmem:[#allocation8 + $0x70] sm:$0xff]
    %v323 = vld [vmem:[#allocation8 + $0x78] sm:$0xff]
    %v324 = vld [vmem:[%s6] sm:$0x1]
    %v326 = vlaneseq
    %v327 = vshrl.u32 %v326, 7
    %v328 = vsub.s32 0, %v327
    %v329 = vrot.slane %v324, %v328
    %331 = vmatprep.subr.mxu0 0.0
    %332 = vmatpush1.msra.mxu0 %v308
    %333 = vmatprep.subr.mxu0 0.0
    %334 = vmatpush1.msra.mxu0 %v309
    %335 = vmatprep.subr.mxu0 0.0
    %336 = vmatpush1.msra.mxu0 %v310
    %337 = vmatprep.subr.mxu0 0.0
    %338 = vmatpush1.msra.mxu0 %v311
    %339 = vmatprep.subr.mxu0 0.0
    %340 = vmatpush1.msra.mxu0 %v312
    %341 = vmatprep.subr.mxu0 0.0
    %342 = vmatpush1.msra.mxu0 %v313
    %343 = vmatprep.subr.mxu0 0.0
    %344 = vmatpush1.msra.mxu0 %v314
    %345 = vmatprep.subr.mxu0 0.0
    %346 = vmatpush1.msra.mxu0 %v315
    %347 = vmatprep.subr.mxu0 0.0
    %348 = vmatpush1.msra.mxu0 %v316
    %349 = vmatprep.subr.mxu0 0.0
    %350 = vmatpush1.msra.mxu0 %v317
    %351 = vmatprep.subr.mxu0 0.0
    %352 = vmatpush1.msra.mxu0 %v318
    %353 = vmatprep.subr.mxu0 0.0
    %354 = vmatpush1.msra.mxu0 %v319
    %355 = vmatprep.subr.mxu0 0.0
    %356 = vmatpush1.msra.mxu0 %v320
    %357 = vmatprep.subr.mxu0 0.0
    %358 = vmatpush1.msra.mxu0 %v321
    %359 = vmatprep.subr.mxu0 0.0
    %360 = vmatpush1.msra.mxu0 %v322
    %361 = vmatprep.subr.mxu0 0.0
    %362 = vmatpush1.msra.mxu0 %v323
    %363 = vmatprep.subr.mxu0 0.0
    %364 = vmatpush1.msra.mxu0 0.0
    %365 = vmatprep.subr.mxu0 0.0
    %366 = vmatpush1.msra.mxu0 0.0
    %367 = vmatprep.subr.mxu0 0.0
    %368 = vmatpush1.msra.mxu0 0.0
    %369 = vmatprep.subr.mxu0 0.0
    %370 = vmatpush1.msra.mxu0 0.0
    %371 = vmatprep.subr.mxu0 0.0
    %372 = vmatpush1.msra.mxu0 0.0
    %373 = vmatprep.subr.mxu0 0.0
    %374 = vmatpush1.msra.mxu0 0.0
    %375 = vmatprep.subr.mxu0 0.0
    %376 = vmatpush1.msra.mxu0 0.0
    %377 = vmatprep.subr.mxu0 0.0
    %378 = vmatpush1.msra.mxu0 0.0
    %379 = vmatprep.subr.mxu0 0.0
    %380 = vmatpush1.msra.mxu0 0.0
    %381 = vmatprep.subr.mxu0 0.0
    %382 = vmatpush1.msra.mxu0 0.0
    %383 = vmatprep.subr.mxu0 0.0
    %384 = vmatpush1.msra.mxu0 0.0
    %385 = vmatprep.subr.mxu0 0.0
    %386 = vmatpush1.msra.mxu0 0.0
    %387 = vmatprep.subr.mxu0 0.0
    %388 = vmatpush1.msra.mxu0 0.0
    %389 = vmatprep.subr.mxu0 0.0
    %390 = vmatpush1.msra.mxu0 0.0
    %391 = vmatprep.subr.mxu0 0.0
    %392 = vmatpush1.msra.mxu0 0.0
    %393 = vmatprep.subr.mxu0 0.0
    %394 = vmatpush1.msra.mxu0 0.0
    %395 = vmatprep.mubr.f32.mxu0 0.0
    %396 = vmatmul.mubr.f32.gmra.mrb[0].mxu0 %v307
    %v397 = vpop.f32.mrb[0].mxu0
    %v398 = vadd.f32 %v329, %v397
    %v399 = vpop.f32.mrb[0].mxu0
    %400 = vdwg.mxu0
    %401 = vst [vmem:[#allocation10] sm:$0xff] %v398
    // Predicated region
    $region46: #{tpu_custom_call.1} parent=1 // pred_check
      _
    $region47: #{tpu_custom_call.1} parent=1 // pred_check_branch
      %403 = sbr.rel (0) target = $region49
    $region48: #{tpu_custom_call.1} parent=1 // pred_region
      %s405 = ssub.s32 128, 128
      %406 = vsyncadd [#allocation4], %s405
      %s408 = sshll.u32 [#allocation10], 4
      %s409 = int_to_ptr.vmem [resolvable:$true] %s408
      %411 = dma.vmem_to_hbm [thread:$0]  %s409, 128, %s7, [#allocation4]
    $region49: #{tpu_custom_call.1} parent=1 // pred_fallthru
      _
    // Predicated region
    $region50: #{tpu_custom_call.1} parent=1 // pred_check
      _
    $region51: #{tpu_custom_call.1} parent=1 // pred_check_branch
      %413 = sbr.rel (0) target = $region53
    $region52: #{tpu_custom_call.1} parent=1 // pred_region
      %414 = dma.done [#allocation4], 128
    $region53: #{tpu_custom_call.1} parent=1 // pred_fallthru
      _
    %415 = vsyncpa [#allocation3], 1
    %416 = vsyncpa [#allocation6], 1
    %417 = vsyncpa [#allocation9], 1
    %418 = vsyncpa [#allocation4], 1

</llo_original>
